<compile_context>
chip_gen: v7x
topology: tpu7x:2x2x1
jax: 0.10.0
libtpu: 0.0.40
codegen_flags: <defaults>
</compile_context>

<pallas_src>
import functools

import jax
import jax.numpy as jnp
from jax.experimental import pallas as pl
from jax.experimental.pallas import tpu as pltpu


_TARGET_BLOCK_BYTES = 2 * 1024 * 1024  # per-input block; 2 inputs x 2 buffers = ~8 MiB VMEM


def _pick_tile(extent: int, target_elems: int, align: int) -> int:
    """Largest divisor of `extent` that is a multiple of `align` and <= target.

    Falls back to the full extent (always legal for a BlockSpec dim) when the
    extent is not a multiple of `align` or no aligned divisor fits the target.
    """
    if extent % align != 0:
        return extent
    cap = max(align, min(extent, target_elems))
    cap -= cap % align
    t = cap
    while t >= align:
        if extent % t == 0:
            return t
        t -= align
    return extent


def _grid_cell_sum_kernel(g_ref, t_ref, o_ref, acc_ref, *, weight_fn, scale):
    # g_ref / t_ref: (tile_m, tile_n)   o_ref: (1, 1) f32   acc_ref: (1, tile_n) f32
    i = pl.program_id(0)
    j = pl.program_id(1)

    @pl.when((i == 0) & (j == 0))
    def _init():
        acc_ref[...] = jnp.zeros_like(acc_ref)

    g = g_ref[...].astype(jnp.float32)
    t = t_ref[...].astype(jnp.float32)
    diff = g - t
    if weight_fn is not None:
        diff = diff * weight_fn(t).astype(jnp.float32)

    # Cheap sublane reduce per step; per-lane partials stay resident in VMEM.
    acc_ref[...] += jnp.sum(diff, axis=0, keepdims=True)

    @pl.when((i == pl.num_programs(0) - 1) & (j == pl.num_programs(1) - 1))
    def _finalize():
        # Single cross-lane reduce + fused (1/norm * 1/numel) normalization.
        o_ref[...] = jnp.sum(acc_ref[...], axis=1, keepdims=True) * scale


def grid_cell_loss(generated_images: jax.Array, targets: jax.Array,
                   weight_fn=None) -> jax.Array:
    """Pallas implementation of GridCellLoss.forward (inputs are (B, T, C, H, W)).

    `weight_fn`, if given, must be a jnp-traceable elementwise function; it is
    applied to the targets tile inside the kernel.
    """
    # TODO(synk): arbitrary torch weight_fn callables are not translatable; only
    # jnp-traceable elementwise functions are supported (default None matches torch).
    assert generated_images.shape == targets.shape, "shape mismatch"
    assert generated_images.ndim == 5, "expected (B, T, C, H, W) inputs"
    B, T, C, H, W = targets.shape

    norm = T * H * W                               # size(1) * size(3) * size(4)
    total = B * T * C * H * W
    scale = 1.0 / (float(norm) * float(total))     # folds /= norm and .mean()

    # Lane-dense 2-D view: trailing dim H*W is a multiple of 128 for typical
    # nowcasting shapes, so every load uses full vreg lanes (no vst/vld masks).
    M, N = B * T * C, H * W
    g2 = generated_images.reshape(M, N)
    t2 = targets.reshape(M, N)

    itemsize = jnp.dtype(targets.dtype).itemsize
    sublane = {4: 8, 2: 16, 1: 32}.get(itemsize, 8)

    # Tile so one input block stays ~<= 2 MiB: with 2 inputs double-buffered
    # that is ~8 MiB of VMEM -> fits every generation's default scoped VMEM
    # (16 MiB v5e, 32 MiB v6e/v7x) and v7x's 64 MiB physical VMEM.
    tile_n = _pick_tile(N, max(128, _TARGET_BLOCK_BYTES // (sublane * itemsize)), 128)
    tile_m = _pick_tile(M, max(sublane, _TARGET_BLOCK_BYTES // (tile_n * itemsize)),
                        sublane)
    grid = (M // tile_m, N // tile_n)

    kernel = functools.partial(_grid_cell_sum_kernel, weight_fn=weight_fn,
                               scale=scale)

    out = pl.pallas_call(
        kernel,
        out_shape=jax.ShapeDtypeStruct((1, 1), jnp.float32),
        grid_spec=pltpu.PrefetchScalarGridSpec(
            num_scalar_prefetch=0,
            grid=grid,
            in_specs=[
                pl.BlockSpec((tile_m, tile_n), lambda i, j: (i, j)),
                pl.BlockSpec((tile_m, tile_n), lambda i, j: (i, j)),
            ],
            out_specs=pl.BlockSpec((1, 1), lambda i, j: (0, 0)),
            scratch_shapes=[pltpu.VMEM((1, tile_n), jnp.float32)],
        ),
        compiler_params=pltpu.CompilerParams(
            # Both grid axes feed one resident accumulator -> reduction axes.
            dimension_semantics=("arbitrary", "arbitrary"),
        ),
        cost_estimate=pl.CostEstimate(
            flops=3 * total,
            transcendentals=0,
            bytes_accessed=2 * total * itemsize + 4,
        ),
    )(g2, t2)

    out_dtype = jnp.result_type(generated_images.dtype, targets.dtype)
    return out[0, 0].astype(out_dtype)


def _grid_cell_loss_ref(generated_images, targets, weight_fn=None):
    """Pure-JAX reference matching the PyTorch module's op order exactly."""
    diff = generated_images - targets
    if weight_fn is not None:
        diff = diff * weight_fn(targets)
    diff = diff / (targets.shape[1] * targets.shape[3] * targets.shape[4])
    return jnp.mean(diff)


if __name__ == "__main__":
    key = jax.random.PRNGKey(0)
    k1, k2 = jax.random.split(key)

    # (batch, time, channels, height, width) — small shapes consistent with the module.
    B, T, C, H, W = 2, 4, 1, 16, 16
    gen = jax.random.normal(k1, (B, T, C, H, W), dtype=jnp.float32)
    tgt = jax.random.normal(k2, (B, T, C, H, W), dtype=jnp.float32)

    # Default path (weight_fn=None), matching GridCellLoss().forward(gen, tgt).
    out = jax.block_until_ready(grid_cell_loss(gen, tgt))
    ref = _grid_cell_loss_ref(gen, tgt)
    assert out.shape == ()
    assert jnp.allclose(out, ref, rtol=1e-4, atol=1e-8), (out, ref)

    # Weighted path with a jnp-traceable weight_fn (as used in the nowcasting repo).
    wfn = lambda y: jnp.clip(y + 1.0, 0.0, 24.0)
    out_w = jax.block_until_ready(grid_cell_loss(gen, tgt, weight_fn=wfn))
    ref_w = _grid_cell_loss_ref(gen, tgt, weight_fn=wfn)
    assert jnp.allclose(out_w, ref_w, rtol=1e-4, atol=1e-8), (out_w, ref_w)

    print("KERNEL_OK")
</pallas_src>

<mosaic_0001>
module attributes {stable_mosaic.version = 11 : i64} {
  func.func @_grid_cell_sum_kernel(%arg0: i32, %arg1: i32, %arg2: memref<8x256xf32, #tpu.memory_space<vmem>>, %arg3: memref<8x256xf32, #tpu.memory_space<vmem>>, %arg4: memref<1x1xf32, #tpu.memory_space<vmem>>, %arg5: memref<1x256xf32, #tpu.memory_space<vmem>>) attributes {dimension_semantics = [#tpu.dimension_semantics<arbitrary>, #tpu.dimension_semantics<arbitrary>], iteration_bounds = array<i64: 1, 1>, scalar_prefetch = 0 : i64, scratch_operands = 1 : i64, tpu.core_type = #tpu.core_type<tc>, window_params = [{transform_indices = @transform_0, window_bounds = array<i64: 8, 256>}, {transform_indices = @transform_1, window_bounds = array<i64: 8, 256>}, {pipeline_mode = #tpu.pipeline_mode<synchronous>, transform_indices = @transform_2, window_bounds = array<i64: 1, 1>}]} {
    %c0_i32 = arith.constant 0 : i32
    %0 = arith.cmpi eq, %arg0, %c0_i32 : i32
    %c0_i32_0 = arith.constant 0 : i32
    %1 = arith.cmpi eq, %arg1, %c0_i32_0 : i32
    %2 = arith.andi %0, %1 : i1
    %3 = arith.extui %2 : i1 to i32
    %c0_i32_1 = arith.constant 0 : i32
    %4 = arith.cmpi ne, %3, %c0_i32_1 : i32
    scf.if %4 {
      %cst_12 = arith.constant 0.000000e+00 : f32
      %18 = vector.broadcast %cst_12 : f32 to vector<1x256xf32>
      %c0_13 = arith.constant 0 : index
      %c0_14 = arith.constant 0 : index
      %19 = vector.load %arg5[%c0_13, %c0_14] : memref<1x256xf32, #tpu.memory_space<vmem>>, vector<1x256xf32>
      tpu.vector_store %arg5[%c0_13, %c0_14], %18 {strides = array<i32>} : memref<1x256xf32, #tpu.memory_space<vmem>>, vector<1x256xf32>,
    } else {
    }
    %c0 = arith.constant 0 : index
    %c0_2 = arith.constant 0 : index
    %5 = vector.load %arg2[%c0, %c0_2] : memref<8x256xf32, #tpu.memory_space<vmem>>, vector<8x256xf32>
    %c0_3 = arith.constant 0 : index
    %c0_4 = arith.constant 0 : index
    %6 = vector.load %arg3[%c0_3, %c0_4] : memref<8x256xf32, #tpu.memory_space<vmem>>, vector<8x256xf32>
    %7 = arith.subf %5, %6 : vector<8x256xf32>
    %c0_5 = arith.constant 0 : index
    %c0_6 = arith.constant 0 : index
    %8 = vector.load %arg5[%c0_5, %c0_6] : memref<1x256xf32, #tpu.memory_space<vmem>>, vector<1x256xf32>
    %cst = arith.constant dense<0.000000e+00> : vector<256xf32>
    %9 = vector.multi_reduction <add>, %7, %cst [0] : vector<8x256xf32> to vector<256xf32>
    %10 = vector.shape_cast %9 : vector<256xf32> to vector<1x256xf32>
    %11 = arith.addf %8, %10 : vector<1x256xf32>
    %c0_7 = arith.constant 0 : index
    %c0_8 = arith.constant 0 : index
    %12 = vector.load %arg5[%c0_7, %c0_8] : memref<1x256xf32, #tpu.memory_space<vmem>>, vector<1x256xf32>
    tpu.vector_store %arg5[%c0_7, %c0_8], %11 {strides = array<i32>} : memref<1x256xf32, #tpu.memory_space<vmem>>, vector<1x256xf32>,
    %c0_i32_9 = arith.constant 0 : i32
    %13 = arith.cmpi eq, %arg0, %c0_i32_9 : i32
    %c0_i32_10 = arith.constant 0 : i32
    %14 = arith.cmpi eq, %arg1, %c0_i32_10 : i32
    %15 = arith.andi %13, %14 : i1
    %16 = arith.extui %15 : i1 to i32
    %c0_i32_11 = arith.constant 0 : i32
    %17 = arith.cmpi ne, %16, %c0_i32_11 : i32
    scf.if %17 {
      %c0_12 = arith.constant 0 : index
      %c0_13 = arith.constant 0 : index
      %18 = vector.load %arg5[%c0_12, %c0_13] : memref<1x256xf32, #tpu.memory_space<vmem>>, vector<1x256xf32>
      %cst_14 = arith.constant dense<0.000000e+00> : vector<1xf32>
      %19 = vector.multi_reduction <add>, %18, %cst_14 [1] : vector<1x256xf32> to vector<1xf32>
      %20 = vector.shape_cast %19 : vector<1xf32> to vector<1x1xf32>
      %cst_15 = arith.constant 4.76837158E-7 : f32
      %21 = vector.broadcast %cst_15 : f32 to vector<1x1xf32>
      %22 = arith.mulf %20, %21 : vector<1x1xf32>
      %c0_16 = arith.constant 0 : index
      %c0_17 = arith.constant 0 : index
      %23 = vector.load %arg4[%c0_16, %c0_17] : memref<1x1xf32, #tpu.memory_space<vmem>>, vector<1x1xf32>
      tpu.vector_store %arg4[%c0_16, %c0_17], %22 {strides = array<i32>} : memref<1x1xf32, #tpu.memory_space<vmem>>, vector<1x1xf32>,
    } else {
    }
    return
  }
  func.func @transform_0(%arg0: i32, %arg1: i32) -> (i32, i32) {
    %c0_i32 = arith.constant 0 : i32
    return %arg0, %arg1 : i32, i32
  }
  func.func @transform_1(%arg0: i32, %arg1: i32) -> (i32, i32) {
    %c0_i32 = arith.constant 0 : i32
    return %arg0, %arg1 : i32, i32
  }
  func.func @transform_2(%arg0: i32, %arg1: i32) -> (i32, i32) {
    %c0_i32 = arith.constant 0 : i32
    %c0_i32_0 = arith.constant 0 : i32
    %c0_i32_1 = arith.constant 0 : i32
    return %c0_i32, %c0_i32_0 : i32, i32
  }
}

</mosaic_0001>

<llo_original>
// kernel: tpu_custom_call.1
$region0: #{tpu_custom_call.1}
  #allocation0 [shape = 'u32[]', space=smem, size = 0x4, offset = 0x4, fixed_abs, tag = 'smem constant byte address 0x4 - core index']
  #allocation1 [shape = 'u32[144,128]{1,0:T(1,128)}', space=vmem, size = 0x12000, scoped, tag = 'internal scratch']
  #allocation2 [shape = 'f32[1,256]{1,0:T(1,128)}', space=vmem, size = 0x400, scoped, tag = 'scratch operand']
  %s0 = inlined_call_operand.hbm [shape: f32[8,256], index: 0, kind: input, shape index: {}]
  %s1 = inlined_call_operand.hbm [shape: f32[8,256], index: 1, kind: input, shape index: {}]
  %s2 = inlined_call_operand.hbm [shape: f32[1,1], index: 2, kind: output, shape index: {}]
  %s3 = sld [smem:[#allocation0]]
  $region34: #{tpu_custom_call.1} parent=0
    _
  %s5 = ssub.s32 1, %s3
  %s6 = scalar_select 0, %s5, %s3
  $region1: #{tpu_custom_call.1} parent=0
    #allocation3 [shape = 'u8[8192]{0}', space=vmem, size = 0x2000, scoped, tag = 'input window, operand 0, single buffered']
    #allocation4 [shape = 's32[1]{0}', space=sflag, size = 0x4, scoped, tag = 'scoped memory for tpu_custom_call.1']
    #allocation5 [shape = 's32[1]{0}', space=sflag, size = 0x4, scoped, tag = 'scoped memory for tpu_custom_call.1']
    #allocation6 [shape = 'u8[8192]{0}', space=vmem, size = 0x2000, scoped, tag = 'input window, operand 1, single buffered']
    #allocation7 [shape = 's32[1]{0}', space=sflag, size = 0x4, scoped, tag = 'scoped memory for tpu_custom_call.1']
    #allocation8 [shape = 'u8[512]{0}', space=vmem, size = 0x400, scoped, tag = 'output window, operand 0, single buffered']
    %7 = vsyncpa [#allocation4], 0
    %8 = vsyncpa [#allocation7], 0
    %9 = vsyncpa [#allocation5], 0
    // Predicated region
    $region2: #{tpu_custom_call.1} parent=1 // pred_check
      _
    $region3: #{tpu_custom_call.1} parent=1 // pred_check_branch
      %11 = sbr.rel (0) target = $region5
    $region4: #{tpu_custom_call.1} parent=1 // pred_region
      %s13 = ssub.s32 256, 256
      %14 = vsyncadd [#allocation4], %s13
      %s16 = sshll.u32 [#allocation3], 4
      %s17 = int_to_ptr.vmem [resolvable:$true] %s16
      %19 = dma.hbm_to_vmem [thread:$0]  %s0, 256, %s17, [#allocation4]
    $region5: #{tpu_custom_call.1} parent=1 // pred_fallthru
      _
    // Predicated region
    $region6: #{tpu_custom_call.1} parent=1 // pred_check
      _
    $region7: #{tpu_custom_call.1} parent=1 // pred_check_branch
      %21 = sbr.rel (0) target = $region9
    $region8: #{tpu_custom_call.1} parent=1 // pred_region
      %s23 = ssub.s32 256, 256
      %24 = vsyncadd [#allocation7], %s23
      %s26 = sshll.u32 [#allocation6], 4
      %s27 = int_to_ptr.vmem [resolvable:$true] %s26
      %29 = dma.hbm_to_vmem [thread:$0]  %s1, 256, %s27, [#allocation7]
    $region9: #{tpu_custom_call.1} parent=1 // pred_fallthru
      _
    // Predicated region
    $region10: #{tpu_custom_call.1} parent=1 // pred_check
      _
    $region11: #{tpu_custom_call.1} parent=1 // pred_check_branch
      %31 = sbr.rel (0) target = $region13
    $region12: #{tpu_custom_call.1} parent=1 // pred_region
      %32 = dma.done [#allocation4], 256
    $region13: #{tpu_custom_call.1} parent=1 // pred_fallthru
      _
    // Predicated region
    $region14: #{tpu_custom_call.1} parent=1 // pred_check
      _
    $region15: #{tpu_custom_call.1} parent=1 // pred_check_branch
      %34 = sbr.rel (0) target = $region17
    $region16: #{tpu_custom_call.1} parent=1 // pred_region
      %35 = dma.done [#allocation7], 256
    $region17: #{tpu_custom_call.1} parent=1 // pred_fallthru
      _
    %p36 = scmp.eq.s32.totalorder 0, 0
    %p37 = scmp.eq.s32.totalorder 0, 0
    %p38 = pnand %p36, %p37
    %p39 = pneg %p38
    // Predicated region
    $region18: #{tpu_custom_call.1} parent=1 // pred_check
      _
    $region19: #{tpu_custom_call.1} parent=1 // pred_check_branch
      %41 = sbr.rel (%p38) target = $region21
    $region20: #{tpu_custom_call.1} parent=1 // pred_region
      %v42 = vlaneseq
      %vm43 = vcmp.ge.s32.totalorder %v42, 0
      %vm44 = vcmp.lt.s32.totalorder %v42, 256
      %vm45 = vmand %vm43, %vm44
      %46 = vst.msk [vmem:[#allocation2] sm:$0x3] %vm45, 0.0
    $region21: #{tpu_custom_call.1} parent=1 // pred_fallthru
      _
    %v47 = vld [vmem:[#allocation3] sm:$0xff]
    %v48 = vld [vmem:[#allocation3 + $0x8] sm:$0xff]
    %v49 = vld [vmem:[#allocation6] sm:$0xff]
    %v50 = vld [vmem:[#allocation6 + $0x8] sm:$0xff]
    %v51 = vsub.f32 %v47, %v49
    %v52 = vsub.f32 %v48, %v50
    %v53 = vld [vmem:[#allocation2] sm:$0x3]
    %v54 = vrot.slane %v51, 4
    %v55 = vadd.f32 %v51, %v54
    %v56 = vrot.slane %v55, 2
    %v57 = vadd.f32 %v55, %v56
    %v58 = vrot.slane %v57, 1
    %v59 = vadd.f32 %v57, %v58
    %v60 = vrot.slane %v52, 4
    %v61 = vadd.f32 %v52, %v60
    %v62 = vrot.slane %v61, 2
    %v63 = vadd.f32 %v61, %v62
    %v64 = vrot.slane %v63, 1
    %v65 = vadd.f32 %v63, %v64
    %v68 = vcombine.low %v59, %v65
    %v70 = vunpack.c.l.s4 1966171168
    %v71 = vunpack.c.0.s8 %v70
    %v72 = vlaneseq
    %v73 = vshrl.u32 %v72, 7
    %v74 = vsub.s32 %v71, %v73
    %v75 = vrot.slane %v68, %v74
    %v77 = vunpack.c.l.s4 1966171168
    %v78 = vunpack.c.0.s8 %v77
    %v79 = vlaneseq
    %v80 = vshrl.u32 %v79, 7
    %v81 = vsub.s32 %v78, %v80
    %v82 = vrot.slane %v75, %v81
    %v84 = vadd.f32 %v53, %v82
    %v85 = vlaneseq
    %vm86 = vcmp.ge.s32.totalorder %v85, 0
    %vm87 = vcmp.lt.s32.totalorder %v85, 256
    %vm88 = vmand %vm86, %vm87
    %89 = vst.msk [vmem:[#allocation2] sm:$0x3] %vm88, %v84
    // Predicated region
    $region22: #{tpu_custom_call.1} parent=1 // pred_check
      _
    $region23: #{tpu_custom_call.1} parent=1 // pred_check_branch
      %91 = sbr.rel (%p38) target = $region25
    $region24: #{tpu_custom_call.1} parent=1 // pred_region
      %v92 = vld [vmem:[#allocation2] sm:$0x3]
      %v94 = vlaneseq
      %v95 = vshrl.u32 %v94, 7
      %v96 = vsub.s32 0, %v95
      %v97 = vrot.slane %v92, %v96
      %v98 = vlaneseq
      %v99 = vshrl.u32 %v98, 7
      %v100 = vsub.s32 1, %v99
      %v101 = vrot.slane %v92, %v100
      %vm104 = vcmask 1040384
      %v105 = vsel %vm104, %v97, 0.0
      %v106 = vsel %vm104, %v101, 0.0
      %v107 = vadd.f32 %v105, %v106
      %108 = vadd.xlane.f32.xlu0 %v107
      %v109 = vpop.xlane.xlu0 %108
      %v110 = vmul.f32 %v109, 4.7683716e-07
      %vm111 = vcmask 0
      %112 = vst.msk [vmem:[#allocation8] sm:$0x1] %vm111, %v110
    $region25: #{tpu_custom_call.1} parent=1 // pred_fallthru
      _
    // Predicated region
    $region26: #{tpu_custom_call.1} parent=1 // pred_check
      _
    $region27: #{tpu_custom_call.1} parent=1 // pred_check_branch
      %114 = sbr.rel (0) target = $region29
    $region28: #{tpu_custom_call.1} parent=1 // pred_region
      %s116 = ssub.s32 16, 16
      %117 = vsyncadd [#allocation5], %s116
      %s119 = sshll.u32 [#allocation8], 4
      %s120 = int_to_ptr.vmem [resolvable:$true] %s119
      %122 = dma.vmem_to_hbm [thread:$0]  %s120, 16, %s2, [#allocation5]
    $region29: #{tpu_custom_call.1} parent=1 // pred_fallthru
      _
    // Predicated region
    $region30: #{tpu_custom_call.1} parent=1 // pred_check
      _
    $region31: #{tpu_custom_call.1} parent=1 // pred_check_branch
      %124 = sbr.rel (0) target = $region33
    $region32: #{tpu_custom_call.1} parent=1 // pred_region
      %125 = dma.done [#allocation5], 16
    $region33: #{tpu_custom_call.1} parent=1 // pred_fallthru
      _
    %126 = vsyncpa [#allocation4], 1
    %127 = vsyncpa [#allocation7], 1
    %128 = vsyncpa [#allocation5], 1

</llo_original>
